<compile_context>
chip_gen: v7x
topology: tpu7x:2x2x1
jax: 0.10.0
libtpu: 0.0.40
codegen_flags: <defaults>
</compile_context>

<pallas_src>
import functools

import jax
import jax.numpy as jnp
from jax import lax
from jax.experimental import pallas as pl
from jax.experimental.pallas import tpu as pltpu


_LN_EPS = 1e-5        # torch.nn.LayerNorm default eps
_OUT_LANES = 128      # lane-dense output slab width


def _round_up(x, m):
    return (x + m - 1) // m * m


# ----------------------------------------------------------------------------
# Kernel
# ----------------------------------------------------------------------------
def _double_prop_kernel(obs_ref, wt_ref, bt_ref, g_ref, be_ref,
                        w1_ref, b1_ref, w2_ref, b2_ref, w3_ref, b3_ref,
                        out_ref):
    """One batch tile: trunk (Linear+LayerNorm+Tanh) + fused MB1/MB2 chain."""
    compute_dtype = w1_ref.dtype

    x = obs_ref[...]

    # ---- trunk: Linear -> LayerNorm -> Tanh (squash math kept in f32) ----
    t = jnp.dot(x, wt_ref[...], preferred_element_type=jnp.float32)
    t = t + bt_ref[...].astype(jnp.float32)
    mean = jnp.mean(t, axis=-1, keepdims=True)
    cen = t - mean
    var = jnp.mean(cen * cen, axis=-1, keepdims=True)
    t = cen * lax.rsqrt(var + _LN_EPS)
    t = t * g_ref[...].astype(jnp.float32) + be_ref[...].astype(jnp.float32)
    h = jnp.tanh(t).astype(compute_dtype)

    # ---- MB1 & MB2 fused: Linear+ReLU, block-diag Linear+ReLU, Linear ----
    z = jnp.dot(h, w1_ref[...], preferred_element_type=jnp.float32)
    z = jnp.maximum(z + b1_ref[...].astype(jnp.float32), 0.0).astype(compute_dtype)

    z = jnp.dot(z, w2_ref[...], preferred_element_type=jnp.float32)
    z = jnp.maximum(z + b2_ref[...].astype(jnp.float32), 0.0).astype(compute_dtype)

    o = jnp.dot(z, w3_ref[...], preferred_element_type=jnp.float32)
    o = o + b3_ref[...].astype(jnp.float32)

    # Lane-dense store: lanes 0..3 = [m1, b1, m2, b2], lanes 4..127 = 0.
    out_ref[...] = o.astype(out_ref.dtype)


# ----------------------------------------------------------------------------
# Wrapper
# ----------------------------------------------------------------------------
@functools.partial(jax.jit, static_argnames=("tile_batch",))
def double_prop_mb_forward(obs, fused_params, tile_batch=256):
    """Runs DoublePropMBEfficient.forward; returns (m1, b1, m2, b2)."""
    wt, bt, gamma, beta, w1, b1, w2, b2, w3, b3 = fused_params
    B, R = obs.shape
    F = wt.shape[1]
    H2 = w1.shape[1]

    compute_dtype = w1.dtype
    obs = obs.astype(compute_dtype)

    # Pad batch to a whole number of tiles (TB multiple of 8 sublanes).
    tb = min(tile_batch, _round_up(B, 8))
    b_pad = _round_up(B, tb)
    if b_pad != B:
        obs = jnp.pad(obs, ((0, b_pad - B), (0, 0)))

    params = (wt, bt, gamma, beta, w1, b1, w2, b2, w3, b3)
    # Weights/biases: full-array blocks, constant index map -> VMEM-resident.
    param_specs = [pl.BlockSpec(p.shape, lambda i: (0, 0)) for p in params]

    flops = 2 * b_pad * (R * F + F * H2 + H2 * H2 + H2 * _OUT_LANES)
    transcendentals = b_pad * (F + 1)       # tanh over features + rsqrt per row
    bytes_accessed = (obs.size * obs.dtype.itemsize
                      + sum(p.size * p.dtype.itemsize for p in params)
                      + b_pad * _OUT_LANES * 4)

    out = pl.pallas_call(
        _double_prop_kernel,
        out_shape=jax.ShapeDtypeStruct((b_pad, _OUT_LANES), jnp.float32),
        grid_spec=pltpu.PrefetchScalarGridSpec(
            num_scalar_prefetch=0,
            grid=(b_pad // tb,),
            in_specs=[pl.BlockSpec((tb, R), lambda i: (i, 0))] + param_specs,
            out_specs=pl.BlockSpec((tb, _OUT_LANES), lambda i: (i, 0)),
        ),
        compiler_params=pltpu.CompilerParams(
            dimension_semantics=("parallel",),
            vmem_limit_bytes=32 * 1024 * 1024,
        ),
        cost_estimate=pl.CostEstimate(
            flops=flops,
            transcendentals=transcendentals,
            bytes_accessed=bytes_accessed,
        ),
    )(obs, *params)

    out = out[:B]
    return out[:, 0:1], out[:, 1:2], out[:, 2:3], out[:, 3:4]


# ----------------------------------------------------------------------------
# Parameter construction (stand-in init) and head fusion
# ----------------------------------------------------------------------------
def init_module_params(key, repr_dim, feature_dim, hidden_dim):
    """Per-submodule params, weights stored (in, out); biases as (1, out) rows."""
    def linear(k, din, dout):
        w = jax.random.normal(k, (din, dout), jnp.float32) / jnp.sqrt(jnp.float32(din))
        return w, jnp.zeros((1, dout), jnp.float32)

    keys = jax.random.split(key, 3)
    wt, bt = linear(keys[0], repr_dim, feature_dim)
    gamma = jnp.ones((1, feature_dim), jnp.float32)
    beta = jnp.zeros((1, feature_dim), jnp.float32)

    def mlp(k):
        k1, k2, k3 = jax.random.split(k, 3)
        return (linear(k1, feature_dim, hidden_dim)
                + linear(k2, hidden_dim, hidden_dim)
                + linear(k3, hidden_dim, 2))

    return dict(trunk=(wt, bt, gamma, beta), mb1=mlp(keys[1]), mb2=mlp(keys[2]))


def fuse_params(raw, dtype=jnp.float32):
    """Fuse MB1/MB2 into one block-diagonal chain + lane-dense output head."""
    wt, bt, gamma, beta = raw["trunk"]
    w1a, b1a, w2a, b2a, w3a, b3a = raw["mb1"]
    w1b, b1b, w2b, b2b, w3b, b3b = raw["mb2"]
    H = w1a.shape[1]

    w1 = jnp.concatenate([w1a, w1b], axis=1)                    # (F, 2H)
    b1 = jnp.concatenate([b1a, b1b], axis=1)                    # (1, 2H)

    w2 = jnp.zeros((2 * H, 2 * H), jnp.float32)
    w2 = w2.at[:H, :H].set(w2a).at[H:, H:].set(w2b)             # block-diagonal
    b2 = jnp.concatenate([b2a, b2b], axis=1)

    w3 = jnp.zeros((2 * H, _OUT_LANES), jnp.float32)
    w3 = w3.at[:H, 0:2].set(w3a).at[H:, 2:4].set(w3b)           # lanes [m1,b1,m2,b2]
    b3 = jnp.zeros((1, _OUT_LANES), jnp.float32)
    b3 = b3.at[:, 0:2].set(b3a).at[:, 2:4].set(b3b)

    fused = (wt, bt, gamma, beta, w1, b1, w2, b2, w3, b3)
    return tuple(p.astype(dtype) for p in fused)


# ----------------------------------------------------------------------------
# Pure-JAX reference (unfused, mirrors the PyTorch module)
# ----------------------------------------------------------------------------
def reference_forward(obs, raw):
    wt, bt, gamma, beta = raw["trunk"]
    t = obs @ wt + bt
    mean = t.mean(-1, keepdims=True)
    var = ((t - mean) ** 2).mean(-1, keepdims=True)
    t = (t - mean) / jnp.sqrt(var + _LN_EPS) * gamma + beta
    h = jnp.tanh(t)

    def mb(hh, p):
        w1, b1, w2, b2, w3, b3 = p
        z = jnp.maximum(hh @ w1 + b1, 0.0)
        z = jnp.maximum(z @ w2 + b2, 0.0)
        return z @ w3 + b3

    o1 = mb(h, raw["mb1"])
    o2 = mb(h, raw["mb2"])
    return o1[:, 0:1], o1[:, 1:2], o2[:, 0:1], o2[:, 1:2]


if __name__ == "__main__":
    batch, repr_dim, feature_dim, hidden_dim = 16, 48, 64, 32

    key = jax.random.PRNGKey(0)
    k_obs, k_par = jax.random.split(key)
    obs = jax.random.normal(k_obs, (batch, repr_dim), jnp.float32)
    raw = init_module_params(k_par, repr_dim, feature_dim, hidden_dim)
    refs = reference_forward(obs, raw)

    # float32 path: tight correctness check against the reference.
    fused_f32 = fuse_params(raw, dtype=jnp.float32)
    outs = double_prop_mb_forward(obs, fused_f32)
    jax.block_until_ready(outs)
    for got, ref in zip(outs, refs):
        assert got.shape == (batch, 1)
        assert jnp.allclose(got, ref, atol=1e-4, rtol=1e-4), \
            float(jnp.max(jnp.abs(got - ref)))

    # bf16 storage / MXU path (f32 accumulation, f32 LayerNorm/tanh): loose check.
    fused_bf16 = fuse_params(raw, dtype=jnp.bfloat16)
    outs_bf16 = double_prop_mb_forward(obs, fused_bf16)
    jax.block_until_ready(outs_bf16)
    for got, ref in zip(outs_bf16, refs):
        assert got.shape == (batch, 1)
        assert bool(jnp.all(jnp.isfinite(got)))
        assert jnp.allclose(got, ref, atol=7e-2, rtol=7e-2), \
            float(jnp.max(jnp.abs(got - ref)))

    print("KERNEL_OK")
</pallas_src>

<mosaic_0001>
module attributes {stable_mosaic.version = 11 : i64} {
  func.func @_double_prop_kernel(%arg0: i32, %arg1: memref<16x48xf32, #tpu.memory_space<vmem>>, %arg2: memref<48x64xf32, #tpu.memory_space<vmem>>, %arg3: memref<1x64xf32, #tpu.memory_space<vmem>>, %arg4: memref<1x64xf32, #tpu.memory_space<vmem>>, %arg5: memref<1x64xf32, #tpu.memory_space<vmem>>, %arg6: memref<64x64xf32, #tpu.memory_space<vmem>>, %arg7: memref<1x64xf32, #tpu.memory_space<vmem>>, %arg8: memref<64x64xf32, #tpu.memory_space<vmem>>, %arg9: memref<1x64xf32, #tpu.memory_space<vmem>>, %arg10: memref<64x128xf32, #tpu.memory_space<vmem>>, %arg11: memref<1x128xf32, #tpu.memory_space<vmem>>, %arg12: memref<16x128xf32, #tpu.memory_space<vmem>>) attributes {dimension_semantics = [#tpu.dimension_semantics<parallel>], iteration_bounds = array<i64: 1>, scalar_prefetch = 0 : i64, scratch_operands = 0 : i64, tpu.core_type = #tpu.core_type<tc>, window_params = [{transform_indices = @transform_0, window_bounds = array<i64: 16, 48>}, {pipeline_mode = #tpu.pipeline_mode<synchronous>, transform_indices = @transform_1, window_bounds = array<i64: 48, 64>}, {pipeline_mode = #tpu.pipeline_mode<synchronous>, transform_indices = @transform_2, window_bounds = array<i64: 1, 64>}, {pipeline_mode = #tpu.pipeline_mode<synchronous>, transform_indices = @transform_3, window_bounds = array<i64: 1, 64>}, {pipeline_mode = #tpu.pipeline_mode<synchronous>, transform_indices = @transform_4, window_bounds = array<i64: 1, 64>}, {pipeline_mode = #tpu.pipeline_mode<synchronous>, transform_indices = @transform_5, window_bounds = array<i64: 64, 64>}, {pipeline_mode = #tpu.pipeline_mode<synchronous>, transform_indices = @transform_6, window_bounds = array<i64: 1, 64>}, {pipeline_mode = #tpu.pipeline_mode<synchronous>, transform_indices = @transform_7, window_bounds = array<i64: 64, 64>}, {pipeline_mode = #tpu.pipeline_mode<synchronous>, transform_indices = @transform_8, window_bounds = array<i64: 1, 64>}, {pipeline_mode = #tpu.pipeline_mode<synchronous>, transform_indices = @transform_9, window_bounds = array<i64: 64, 128>}, {pipeline_mode = #tpu.pipeline_mode<synchronous>, transform_indices = @transform_10, window_bounds = array<i64: 1, 128>}, {transform_indices = @transform_11, window_bounds = array<i64: 16, 128>}]} {
    %c0 = arith.constant 0 : index
    %c0_0 = arith.constant 0 : index
    %0 = vector.load %arg1[%c0, %c0_0] : memref<16x48xf32, #tpu.memory_space<vmem>>, vector<16x48xf32>
    %c0_1 = arith.constant 0 : index
    %c0_2 = arith.constant 0 : index
    %1 = vector.load %arg2[%c0_1, %c0_2] : memref<48x64xf32, #tpu.memory_space<vmem>>, vector<48x64xf32>
    %cst = arith.constant dense<0.000000e+00> : vector<16x64xf32>
    %2 = tpu.matmul %0, %1, %cst {dimension_numbers = #tpu.dot_dimension_numbers<[1], [0], [0], [1], [0, 0, 1, 1], [], []>} : vector<16x48xf32>, vector<48x64xf32>, vector<16x64xf32> -> vector<16x64xf32>
    %c0_3 = arith.constant 0 : index
    %c0_4 = arith.constant 0 : index
    %3 = vector.load %arg3[%c0_3, %c0_4] : memref<1x64xf32, #tpu.memory_space<vmem>>, vector<1x64xf32>
    %4 = vector.broadcast %3 : vector<1x64xf32> to vector<16x64xf32>
    %5 = arith.addf %2, %4 : vector<16x64xf32>
    %cst_5 = arith.constant dense<0.000000e+00> : vector<16xf32>
    %6 = vector.multi_reduction <add>, %5, %cst_5 [1] : vector<16x64xf32> to vector<16xf32>
    %7 = vector.shape_cast %6 : vector<16xf32> to vector<16x1xf32>
    %cst_6 = arith.constant 6.400000e+01 : f32
    %8 = vector.broadcast %cst_6 : f32 to vector<16x1xf32>
    %9 = arith.divf %7, %8 : vector<16x1xf32>
    %10 = vector.broadcast %9 : vector<16x1xf32> to vector<16x64xf32>
    %11 = arith.subf %5, %10 : vector<16x64xf32>
    %12 = arith.mulf %11, %11 : vector<16x64xf32>
    %cst_7 = arith.constant dense<0.000000e+00> : vector<16xf32>
    %13 = vector.multi_reduction <add>, %12, %cst_7 [1] : vector<16x64xf32> to vector<16xf32>
    %14 = vector.shape_cast %13 : vector<16xf32> to vector<16x1xf32>
    %cst_8 = arith.constant 6.400000e+01 : f32
    %15 = vector.broadcast %cst_8 : f32 to vector<16x1xf32>
    %16 = arith.divf %14, %15 : vector<16x1xf32>
    %cst_9 = arith.constant 9.99999974E-6 : f32
    %17 = vector.broadcast %cst_9 : f32 to vector<16x1xf32>
    %18 = arith.addf %16, %17 : vector<16x1xf32>
    %19 = math.rsqrt %18 : vector<16x1xf32>
    %20 = vector.broadcast %19 : vector<16x1xf32> to vector<16x64xf32>
    %21 = arith.mulf %11, %20 : vector<16x64xf32>
    %c0_10 = arith.constant 0 : index
    %c0_11 = arith.constant 0 : index
    %22 = vector.load %arg4[%c0_10, %c0_11] : memref<1x64xf32, #tpu.memory_space<vmem>>, vector<1x64xf32>
    %23 = vector.broadcast %22 : vector<1x64xf32> to vector<16x64xf32>
    %24 = arith.mulf %21, %23 : vector<16x64xf32>
    %c0_12 = arith.constant 0 : index
    %c0_13 = arith.constant 0 : index
    %25 = vector.load %arg5[%c0_12, %c0_13] : memref<1x64xf32, #tpu.memory_space<vmem>>, vector<1x64xf32>
    %26 = vector.broadcast %25 : vector<1x64xf32> to vector<16x64xf32>
    %27 = arith.addf %24, %26 : vector<16x64xf32>
    %28 = math.tanh %27 : vector<16x64xf32>
    %c0_14 = arith.constant 0 : index
    %c0_15 = arith.constant 0 : index
    %29 = vector.load %arg6[%c0_14, %c0_15] : memref<64x64xf32, #tpu.memory_space<vmem>>, vector<64x64xf32>
    %cst_16 = arith.constant dense<0.000000e+00> : vector<16x64xf32>
    %30 = tpu.matmul %28, %29, %cst_16 {dimension_numbers = #tpu.dot_dimension_numbers<[1], [0], [0], [1], [0, 0, 1, 1], [], []>} : vector<16x64xf32>, vector<64x64xf32>, vector<16x64xf32> -> vector<16x64xf32>
    %c0_17 = arith.constant 0 : index
    %c0_18 = arith.constant 0 : index
    %31 = vector.load %arg7[%c0_17, %c0_18] : memref<1x64xf32, #tpu.memory_space<vmem>>, vector<1x64xf32>
    %32 = vector.broadcast %31 : vector<1x64xf32> to vector<16x64xf32>
    %33 = arith.addf %30, %32 : vector<16x64xf32>
    %cst_19 = arith.constant 0.000000e+00 : f32
    %34 = vector.broadcast %cst_19 : f32 to vector<16x64xf32>
    %35 = arith.maximumf %33, %34 : vector<16x64xf32>
    %c0_20 = arith.constant 0 : index
    %c0_21 = arith.constant 0 : index
    %36 = vector.load %arg8[%c0_20, %c0_21] : memref<64x64xf32, #tpu.memory_space<vmem>>, vector<64x64xf32>
    %cst_22 = arith.constant dense<0.000000e+00> : vector<16x64xf32>
    %37 = tpu.matmul %35, %36, %cst_22 {dimension_numbers = #tpu.dot_dimension_numbers<[1], [0], [0], [1], [0, 0, 1, 1], [], []>} : vector<16x64xf32>, vector<64x64xf32>, vector<16x64xf32> -> vector<16x64xf32>
    %c0_23 = arith.constant 0 : index
    %c0_24 = arith.constant 0 : index
    %38 = vector.load %arg9[%c0_23, %c0_24] : memref<1x64xf32, #tpu.memory_space<vmem>>, vector<1x64xf32>
    %39 = vector.broadcast %38 : vector<1x64xf32> to vector<16x64xf32>
    %40 = arith.addf %37, %39 : vector<16x64xf32>
    %cst_25 = arith.constant 0.000000e+00 : f32
    %41 = vector.broadcast %cst_25 : f32 to vector<16x64xf32>
    %42 = arith.maximumf %40, %41 : vector<16x64xf32>
    %c0_26 = arith.constant 0 : index
    %c0_27 = arith.constant 0 : index
    %43 = vector.load %arg10[%c0_26, %c0_27] : memref<64x128xf32, #tpu.memory_space<vmem>>, vector<64x128xf32>
    %cst_28 = arith.constant dense<0.000000e+00> : vector<16x128xf32>
    %44 = tpu.matmul %42, %43, %cst_28 {dimension_numbers = #tpu.dot_dimension_numbers<[1], [0], [0], [1], [0, 0, 1, 1], [], []>} : vector<16x64xf32>, vector<64x128xf32>, vector<16x128xf32> -> vector<16x128xf32>
    %c0_29 = arith.constant 0 : index
    %c0_30 = arith.constant 0 : index
    %45 = vector.load %arg11[%c0_29, %c0_30] : memref<1x128xf32, #tpu.memory_space<vmem>>, vector<1x128xf32>
    %46 = vector.broadcast %45 : vector<1x128xf32> to vector<16x128xf32>
    %47 = arith.addf %44, %46 : vector<16x128xf32>
    %c0_31 = arith.constant 0 : index
    %c0_32 = arith.constant 0 : index
    %48 = vector.load %arg12[%c0_31, %c0_32] : memref<16x128xf32, #tpu.memory_space<vmem>>, vector<16x128xf32>
    tpu.vector_store %arg12[%c0_31, %c0_32], %47 {strides = array<i32>} : memref<16x128xf32, #tpu.memory_space<vmem>>, vector<16x128xf32>,
    return
  }
  func.func @transform_0(%arg0: i32) -> (i32, i32) {
    %c0_i32 = arith.constant 0 : i32
    %c0_i32_0 = arith.constant 0 : i32
    return %arg0, %c0_i32 : i32, i32
  }
  func.func @transform_1(%arg0: i32) -> (i32, i32) {
    %c0_i32 = arith.constant 0 : i32
    %c0_i32_0 = arith.constant 0 : i32
    %c0_i32_1 = arith.constant 0 : i32
    return %c0_i32, %c0_i32_0 : i32, i32
  }
  func.func @transform_2(%arg0: i32) -> (i32, i32) {
    %c0_i32 = arith.constant 0 : i32
    %c0_i32_0 = arith.constant 0 : i32
    %c0_i32_1 = arith.constant 0 : i32
    return %c0_i32, %c0_i32_0 : i32, i32
  }
  func.func @transform_3(%arg0: i32) -> (i32, i32) {
    %c0_i32 = arith.constant 0 : i32
    %c0_i32_0 = arith.constant 0 : i32
    %c0_i32_1 = arith.constant 0 : i32
    return %c0_i32, %c0_i32_0 : i32, i32
  }
  func.func @transform_4(%arg0: i32) -> (i32, i32) {
    %c0_i32 = arith.constant 0 : i32
    %c0_i32_0 = arith.constant 0 : i32
    %c0_i32_1 = arith.constant 0 : i32
    return %c0_i32, %c0_i32_0 : i32, i32
  }
  func.func @transform_5(%arg0: i32) -> (i32, i32) {
    %c0_i32 = arith.constant 0 : i32
    %c0_i32_0 = arith.constant 0 : i32
    %c0_i32_1 = arith.constant 0 : i32
    return %c0_i32, %c0_i32_0 : i32, i32
  }
  func.func @transform_6(%arg0: i32) -> (i32, i32) {
    %c0_i32 = arith.constant 0 : i32
    %c0_i32_0 = arith.constant 0 : i32
    %c0_i32_1 = arith.constant 0 : i32
    return %c0_i32, %c0_i32_0 : i32, i32
  }
  func.func @transform_7(%arg0: i32) -> (i32, i32) {
    %c0_i32 = arith.constant 0 : i32
    %c0_i32_0 = arith.constant 0 : i32
    %c0_i32_1 = arith.constant 0 : i32
    return %c0_i32, %c0_i32_0 : i32, i32
  }
  func.func @transform_8(%arg0: i32) -> (i32, i32) {
    %c0_i32 = arith.constant 0 : i32
    %c0_i32_0 = arith.constant 0 : i32
    %c0_i32_1 = arith.constant 0 : i32
    return %c0_i32, %c0_i32_0 : i32, i32
  }
  func.func @transform_9(%arg0: i32) -> (i32, i32) {
    %c0_i32 = arith.constant 0 : i32
    %c0_i32_0 = arith.constant 0 : i32
    %c0_i32_1 = arith.constant 0 : i32
    return %c0_i32, %c0_i32_0 : i32, i32
  }
  func.func @transform_10(%arg0: i32) -> (i32, i32) {
    %c0_i32 = arith.constant 0 : i32
    %c0_i32_0 = arith.constant 0 : i32
    %c0_i32_1 = arith.constant 0 : i32
    return %c0_i32, %c0_i32_0 : i32, i32
  }
  func.func @transform_11(%arg0: i32) -> (i32, i32) {
    %c0_i32 = arith.constant 0 : i32
    %c0_i32_0 = arith.constant 0 : i32
    return %arg0, %c0_i32 : i32, i32
  }
}

</mosaic_0001>

<llo_original>
// kernel: double_prop_mb_forward.1
$region0: #{double_prop_mb_forward.1}
  #allocation0 [shape = 'u32[]', space=smem, size = 0x4, offset = 0x4, fixed_abs, tag = 'smem constant byte address 0x4 - core index']
  #allocation1 [shape = 'u32[144,128]{1,0:T(1,128)}', space=vmem, size = 0x12000, scoped, tag = 'internal scratch']
  %s0 = inlined_call_operand.hbm [shape: f32[16,48], index: 0, kind: input, shape index: {}]
  %s1 = inlined_call_operand.hbm [shape: f32[48,64], index: 1, kind: input, shape index: {}]
  %s2 = inlined_call_operand.vmem [shape: f32[1,64], index: 2, kind: input, shape index: {}]
  %s3 = inlined_call_operand.vmem [shape: f32[1,64], index: 3, kind: input, shape index: {}]
  %s4 = inlined_call_operand.vmem [shape: f32[1,64], index: 4, kind: input, shape index: {}]
  %s5 = inlined_call_operand.hbm [shape: f32[64,64], index: 5, kind: input, shape index: {}]
  %s6 = inlined_call_operand.vmem [shape: f32[1,64], index: 6, kind: input, shape index: {}]
  %s7 = inlined_call_operand.hbm [shape: f32[64,64], index: 7, kind: input, shape index: {}]
  %s8 = inlined_call_operand.vmem [shape: f32[1,64], index: 8, kind: input, shape index: {}]
  %s9 = inlined_call_operand.hbm [shape: f32[64,128], index: 9, kind: input, shape index: {}]
  %s10 = inlined_call_operand.vmem [shape: f32[1,128], index: 10, kind: input, shape index: {}]
  %s11 = inlined_call_operand.vmem [shape: f32[16,128], index: 11, kind: output, shape index: {}]
  %s12 = sld [smem:[#allocation0]]
  $region74: #{double_prop_mb_forward.1} parent=0
    _
  %s14 = ssub.s32 1, %s12
  %s15 = scalar_select 0, %s14, %s12
  $region1: #{double_prop_mb_forward.1} parent=0
    #allocation2 [shape = 'u8[8192]{0}', space=vmem, size = 0x2000, scoped, tag = 'input window, operand 0, single buffered']
    #allocation3 [shape = 's32[1]{0}', space=sflag, size = 0x4, scoped, tag = 'scoped memory for double_prop_mb_forward.1']
    #allocation4 [shape = 'u8[24576]{0}', space=vmem, size = 0x6000, scoped, tag = 'input window, operand 1, single buffered']
    #allocation5 [shape = 's32[1]{0}', space=sflag, size = 0x4, scoped, tag = 'scoped memory for double_prop_mb_forward.1']
    #allocation6 [shape = 'u8[32768]{0}', space=vmem, size = 0x8000, scoped, tag = 'input window, operand 5, single buffered']
    #allocation7 [shape = 'u8[32768]{0}', space=vmem, size = 0x8000, scoped, tag = 'input window, operand 7, single buffered']
    #allocation8 [shape = 's32[1]{0}', space=sflag, size = 0x4, scoped, tag = 'scoped memory for double_prop_mb_forward.1']
    #allocation9 [shape = 'u8[32768]{0}', space=vmem, size = 0x8000, scoped, tag = 'input window, operand 9, single buffered']
    %16 = vsyncpa [#allocation3], 0
    %17 = vsyncpa [#allocation5], 0
    %18 = vsyncpa [#allocation8], 0
    // Predicated region
    $region2: #{double_prop_mb_forward.1} parent=1 // pred_check
      _
    $region3: #{double_prop_mb_forward.1} parent=1 // pred_check_branch
      %20 = sbr.rel (0) target = $region5
    $region4: #{double_prop_mb_forward.1} parent=1 // pred_region
      %s22 = ssub.s32 256, 256
      %23 = vsyncadd [#allocation3], %s22
      %s24 = sshll.u32 [#allocation2], 4
      %s25 = int_to_ptr.vmem [resolvable:$true] %s24
      %30 = dma.hbm_to_vmem [thread:$0]  %s0, 256, %s25, [#allocation3], 128, 128, 8
    $region5: #{double_prop_mb_forward.1} parent=1 // pred_fallthru
      _
    // Predicated region
    $region6: #{double_prop_mb_forward.1} parent=1 // pred_check
      _
    $region7: #{double_prop_mb_forward.1} parent=1 // pred_check_branch
      %32 = sbr.rel (0) target = $region9
    $region8: #{double_prop_mb_forward.1} parent=1 // pred_region
      %s34 = ssub.s32 768, 768
      %35 = vsyncadd [#allocation5], %s34
      %s36 = sshll.u32 [#allocation4], 4
      %s37 = int_to_ptr.vmem [resolvable:$true] %s36
      %42 = dma.hbm_to_vmem [thread:$0]  %s1, 768, %s37, [#allocation5], 128, 128, 8
    $region9: #{double_prop_mb_forward.1} parent=1 // pred_fallthru
      _
    // Predicated region
    $region10: #{double_prop_mb_forward.1} parent=1 // pred_check
      _
    $region11: #{double_prop_mb_forward.1} parent=1 // pred_check_branch
      %44 = sbr.rel (0) target = $region13
    $region12: #{double_prop_mb_forward.1} parent=1 // pred_region
      _
    $region13: #{double_prop_mb_forward.1} parent=1 // pred_fallthru
      _
    // Predicated region
    $region14: #{double_prop_mb_forward.1} parent=1 // pred_check
      _
    $region15: #{double_prop_mb_forward.1} parent=1 // pred_check_branch
      %46 = sbr.rel (0) target = $region17
    $region16: #{double_prop_mb_forward.1} parent=1 // pred_region
      _
    $region17: #{double_prop_mb_forward.1} parent=1 // pred_fallthru
      _
    // Predicated region
    $region18: #{double_prop_mb_forward.1} parent=1 // pred_check
      _
    $region19: #{double_prop_mb_forward.1} parent=1 // pred_check_branch
      %48 = sbr.rel (0) target = $region21
    $region20: #{double_prop_mb_forward.1} parent=1 // pred_region
      _
    $region21: #{double_prop_mb_forward.1} parent=1 // pred_fallthru
      _
    // Predicated region
    $region22: #{double_prop_mb_forward.1} parent=1 // pred_check
      _
    $region23: #{double_prop_mb_forward.1} parent=1 // pred_check_branch
      %50 = sbr.rel (0) target = $region25
    $region24: #{double_prop_mb_forward.1} parent=1 // pred_region
      %s52 = ssub.s32 1024, 1024
      %53 = vsyncadd [#allocation5], %s52
      %s54 = sshll.u32 [#allocation6], 4
      %s55 = int_to_ptr.vmem [resolvable:$true] %s54
      %60 = dma.hbm_to_vmem [thread:$0]  %s5, 1024, %s55, [#allocation5], 128, 128, 8
    $region25: #{double_prop_mb_forward.1} parent=1 // pred_fallthru
      _
    // Predicated region
    $region26: #{double_prop_mb_forward.1} parent=1 // pred_check
      _
    $region27: #{double_prop_mb_forward.1} parent=1 // pred_check_branch
      %62 = sbr.rel (0) target = $region29
    $region28: #{double_prop_mb_forward.1} parent=1 // pred_region
      _
    $region29: #{double_prop_mb_forward.1} parent=1 // pred_fallthru
      _
    // Predicated region
    $region30: #{double_prop_mb_forward.1} parent=1 // pred_check
      _
    $region31: #{double_prop_mb_forward.1} parent=1 // pred_check_branch
      %64 = sbr.rel (0) target = $region33
    $region32: #{double_prop_mb_forward.1} parent=1 // pred_region
      %s66 = ssub.s32 1024, 1024
      %67 = vsyncadd [#allocation8], %s66
      %s68 = sshll.u32 [#allocation7], 4
      %s69 = int_to_ptr.vmem [resolvable:$true] %s68
      %74 = dma.hbm_to_vmem [thread:$0]  %s7, 1024, %s69, [#allocation8], 128, 128, 8
    $region33: #{double_prop_mb_forward.1} parent=1 // pred_fallthru
      _
    // Predicated region
    $region34: #{double_prop_mb_forward.1} parent=1 // pred_check
      _
    $region35: #{double_prop_mb_forward.1} parent=1 // pred_check_branch
      %76 = sbr.rel (0) target = $region37
    $region36: #{double_prop_mb_forward.1} parent=1 // pred_region
      _
    $region37: #{double_prop_mb_forward.1} parent=1 // pred_fallthru
      _
    // Predicated region
    $region38: #{double_prop_mb_forward.1} parent=1 // pred_check
      _
    $region39: #{double_prop_mb_forward.1} parent=1 // pred_check_branch
      %78 = sbr.rel (0) target = $region41
    $region40: #{double_prop_mb_forward.1} parent=1 // pred_region
      %s80 = ssub.s32 1024, 1024
      %81 = vsyncadd [#allocation8], %s80
      %s82 = sshll.u32 [#allocation9], 4
      %s83 = int_to_ptr.vmem [resolvable:$true] %s82
      %88 = dma.hbm_to_vmem [thread:$0]  %s9, 1024, %s83, [#allocation8], 128, 128, 8
    $region41: #{double_prop_mb_forward.1} parent=1 // pred_fallthru
      _
    // Predicated region
    $region42: #{double_prop_mb_forward.1} parent=1 // pred_check
      _
    $region43: #{double_prop_mb_forward.1} parent=1 // pred_check_branch
      %90 = sbr.rel (0) target = $region45
    $region44: #{double_prop_mb_forward.1} parent=1 // pred_region
      _
    $region45: #{double_prop_mb_forward.1} parent=1 // pred_fallthru
      _
    // Predicated region
    $region46: #{double_prop_mb_forward.1} parent=1 // pred_check
      _
    $region47: #{double_prop_mb_forward.1} parent=1 // pred_check_branch
      %92 = sbr.rel (0) target = $region49
    $region48: #{double_prop_mb_forward.1} parent=1 // pred_region
      %93 = dma.done [#allocation3], 256
    $region49: #{double_prop_mb_forward.1} parent=1 // pred_fallthru
      _
    // Predicated region
    $region50: #{double_prop_mb_forward.1} parent=1 // pred_check
      _
    $region51: #{double_prop_mb_forward.1} parent=1 // pred_check_branch
      %95 = sbr.rel (0) target = $region53
    $region52: #{double_prop_mb_forward.1} parent=1 // pred_region
      %96 = dma.done [#allocation5], 768
    $region53: #{double_prop_mb_forward.1} parent=1 // pred_fallthru
      _
    // Predicated region
    $region54: #{double_prop_mb_forward.1} parent=1 // pred_check
      _
    $region55: #{double_prop_mb_forward.1} parent=1 // pred_check_branch
      %98 = sbr.rel (0) target = $region57
    $region56: #{double_prop_mb_forward.1} parent=1 // pred_region
      %99 = dma.done [#allocation5], 1024
    $region57: #{double_prop_mb_forward.1} parent=1 // pred_fallthru
      _
    // Predicated region
    $region58: #{double_prop_mb_forward.1} parent=1 // pred_check
      _
    $region59: #{double_prop_mb_forward.1} parent=1 // pred_check_branch
      %101 = sbr.rel (0) target = $region61
    $region60: #{double_prop_mb_forward.1} parent=1 // pred_region
      %102 = dma.done [#allocation8], 1024
    $region61: #{double_prop_mb_forward.1} parent=1 // pred_fallthru
      _
    // Predicated region
    $region62: #{double_prop_mb_forward.1} parent=1 // pred_check
      _
    $region63: #{double_prop_mb_forward.1} parent=1 // pred_check_branch
      %104 = sbr.rel (0) target = $region65
    $region64: #{double_prop_mb_forward.1} parent=1 // pred_region
      %105 = dma.done [#allocation8], 1024
    $region65: #{double_prop_mb_forward.1} parent=1 // pred_fallthru
      _
    %v106 = vld [vmem:[#allocation2] sm:$0xff]
    %v107 = vld [vmem:[#allocation2 + $0x8] sm:$0xff]
    %v108 = vld [vmem:[#allocation4] sm:$0xff]
    %v109 = vld [vmem:[#allocation4 + $0x8] sm:$0xff]
    %v110 = vld [vmem:[#allocation4 + $0x10] sm:$0xff]
    %v111 = vld [vmem:[#allocation4 + $0x18] sm:$0xff]
    %v112 = vld [vmem:[#allocation4 + $0x20] sm:$0xff]
    %v113 = vld [vmem:[#allocation4 + $0x28] sm:$0xff]
    %v114 = vld [vmem:[%s2] sm:$0x1]
    %v116 = vlaneseq
    %v117 = vshrl.u32 %v116, 7
    %v118 = vsub.s32 0, %v117
    %v119 = vrot.slane %v114, %v118
    %vm121 = vcmask 392192
    %v123 = vsel %vm121, %v106, 0
    %v126 = vsel %vm121, %v107, 0
    %128 = vmatprep.subr.mxu0 0.0
    %129 = vmatpush1.msra.mxu0 %v108
    %130 = vmatprep.subr.mxu0 0.0
    %131 = vmatpush1.msra.mxu0 %v109
    %132 = vmatprep.subr.mxu0 0.0
    %133 = vmatpush1.msra.mxu0 %v110
    %134 = vmatprep.subr.mxu0 0.0
    %135 = vmatpush1.msra.mxu0 %v111
    %136 = vmatprep.subr.mxu0 0.0
    %137 = vmatpush1.msra.mxu0 %v112
    %138 = vmatprep.subr.mxu0 0.0
    %139 = vmatpush1.msra.mxu0 %v113
    %140 = vmatprep.subr.mxu0 0.0
    %141 = vmatpush1.msra.mxu0 0.0
    %142 = vmatprep.subr.mxu0 0.0
    %143 = vmatpush1.msra.mxu0 0.0
    %144 = vmatprep.subr.mxu0 0.0
    %145 = vmatpush1.msra.mxu0 0.0
    %146 = vmatprep.subr.mxu0 0.0
    %147 = vmatpush1.msra.mxu0 0.0
    %148 = vmatprep.subr.mxu0 0.0
    %149 = vmatpush1.msra.mxu0 0.0
    %150 = vmatprep.subr.mxu0 0.0
    %151 = vmatpush1.msra.mxu0 0.0
    %152 = vmatprep.subr.mxu0 0.0
    %153 = vmatpush1.msra.mxu0 0.0
    %154 = vmatprep.subr.mxu0 0.0
    %155 = vmatpush1.msra.mxu0 0.0
    %156 = vmatprep.subr.mxu0 0.0
    %157 = vmatpush1.msra.mxu0 0.0
    %158 = vmatprep.subr.mxu0 0.0
    %159 = vmatpush1.msra.mxu0 0.0
    %160 = vmatprep.subr.mxu0 0.0
    %161 = vmatpush1.msra.mxu0 0.0
    %162 = vmatprep.subr.mxu0 0.0
    %163 = vmatpush1.msra.mxu0 0.0
    %164 = vmatprep.subr.mxu0 0.0
    %165 = vmatpush1.msra.mxu0 0.0
    %166 = vmatprep.subr.mxu0 0.0
    %167 = vmatpush1.msra.mxu0 0.0
    %168 = vmatprep.subr.mxu0 0.0
    %169 = vmatpush1.msra.mxu0 0.0
    %170 = vmatprep.subr.mxu0 0.0
    %171 = vmatpush1.msra.mxu0 0.0
    %172 = vmatprep.subr.mxu0 0.0
    %173 = vmatpush1.msra.mxu0 0.0
    %174 = vmatprep.subr.mxu0 0.0
    %175 = vmatpush1.msra.mxu0 0.0
    %176 = vmatprep.subr.mxu0 0.0
    %177 = vmatpush1.msra.mxu0 0.0
    %178 = vmatprep.subr.mxu0 0.0
    %179 = vmatpush1.msra.mxu0 0.0
    %180 = vmatprep.subr.mxu0 0.0
    %181 = vmatpush1.msra.mxu0 0.0
    %182 = vmatprep.subr.mxu0 0.0
    %183 = vmatpush1.msra.mxu0 0.0
    %184 = vmatprep.subr.mxu0 0.0
    %185 = vmatpush1.msra.mxu0 0.0
    %186 = vmatprep.subr.mxu0 0.0
    %187 = vmatpush1.msra.mxu0 0.0
    %188 = vmatprep.subr.mxu0 0.0
    %189 = vmatpush1.msra.mxu0 0.0
    %190 = vmatprep.subr.mxu0 0.0
    %191 = vmatpush1.msra.mxu0 0.0
    %192 = vmatprep.mubr.f32.mxu0 0.0
    %193 = vmatmul.mubr.f32.gmra.mrb[0].mxu0 %v123
    %v194 = vpop.f32.mrb[0].mxu0
    %v195 = vadd.f32 %v119, %v194
    %v196 = vpop.f32.mrb[0].mxu0
    %197 = vmatprep.mubr.f32.mxu0 0.0
    %198 = vmatmul.mubr.f32.gmra.mrb[0].mxu0 %v126
    %v199 = vpop.f32.mrb[0].mxu0
    %v200 = vadd.f32 %v119, %v199
    %v201 = vpop.f32.mrb[0].mxu0
    %202 = vdwg.mxu0
    %vm203 = vcmask 523264
    %v204 = vsel %vm203, %v195, 0.0
    %205 = vadd.xlane.f32.xlu0 %v204
    %v206 = vpop.xlane.xlu0 %205
    %v207 = vsel %vm203, %v200, 0.0
    %208 = vadd.xlane.f32.xlu0 %v207
    %v209 = vpop.xlane.xlu0 %208
    %v210 = vrcp.pop 64.0
    %v211 = vmul.f32 %v206, %v210
    %v212 = vmul.f32 %v209, %v210
    %v213 = vsub.f32 %v195, %v211
    %v214 = vsub.f32 %v200, %v212
    %v215 = vmul.f32 %v213, %v213
    %v216 = vmul.f32 %v214, %v214
    %v217 = vsel %vm203, %v215, 0.0
    %218 = vadd.xlane.f32.xlu0 %v217
    %v219 = vpop.xlane.xlu0 %218
    %v220 = vsel %vm203, %v216, 0.0
    %221 = vadd.xlane.f32.xlu0 %v220
    %v222 = vpop.xlane.xlu0 %221
    %v223 = vmul.f32 %v219, %v210
    %v224 = vmul.f32 %v222, %v210
    %v225 = vadd.f32 %v223, 1e-05
    %v226 = vadd.f32 %v224, 1e-05
    %v227 = vrsqrt.pop %v225
    %v228 = vrsqrt.pop %v226
    %v229 = vmul.f32 %v213, %v227
    %v230 = vmul.f32 %v214, %v228
    %v231 = vld [vmem:[%s3] sm:$0x1]
    %v233 = vlaneseq
    %v234 = vshrl.u32 %v233, 7
    %v235 = vsub.s32 0, %v234
    %v236 = vrot.slane %v231, %v235
    %v238 = vmul.f32 %v229, %v236
    %v239 = vmul.f32 %v230, %v236
    %v240 = vld [vmem:[%s4] sm:$0x1]
    %v242 = vlaneseq
    %v243 = vshrl.u32 %v242, 7
    %v244 = vsub.s32 0, %v243
    %v245 = vrot.slane %v240, %v244
    %v247 = vadd.f32 %v238, %v245
    %v248 = vadd.f32 %v239, %v245
    %v249 = vtanh.pop %v247
    %v250 = vtanh.pop %v248
    %v251 = vld [vmem:[#allocation6] sm:$0xff]
    %v252 = vld [vmem:[#allocation6 + $0x8] sm:$0xff]
    %v253 = vld [vmem:[#allocation6 + $0x10] sm:$0xff]
    %v254 = vld [vmem:[#allocation6 + $0x18] sm:$0xff]
    %v255 = vld [vmem:[#allocation6 + $0x20] sm:$0xff]
    %v256 = vld [vmem:[#allocation6 + $0x28] sm:$0xff]
    %v257 = vld [vmem:[#allocation6 + $0x30] sm:$0xff]
    %v258 = vld [vmem:[#allocation6 + $0x38] sm:$0xff]
    %v259 = vld [vmem:[%s6] sm:$0x1]
    %v261 = vlaneseq
    %v262 = vshrl.u32 %v261, 7
    %v263 = vsub.s32 0, %v262
    %v264 = vrot.slane %v259, %v263
    %v267 = vsel %vm203, %v249, 0
    %v270 = vsel %vm203, %v250, 0
    %272 = vmatprep.subr.mxu0 0.0
    %273 = vmatpush1.msra.mxu0 %v251
    %274 = vmatprep.subr.mxu0 0.0
    %275 = vmatpush1.msra.mxu0 %v252
    %276 = vmatprep.subr.mxu0 0.0
    %277 = vmatpush1.msra.mxu0 %v253
    %278 = vmatprep.subr.mxu0 0.0
    %279 = vmatpush1.msra.mxu0 %v254
    %280 = vmatprep.subr.mxu0 0.0
    %281 = vmatpush1.msra.mxu0 %v255
    %282 = vmatprep.subr.mxu0 0.0
    %283 = vmatpush1.msra.mxu0 %v256
    %284 = vmatprep.subr.mxu0 0.0
    %285 = vmatpush1.msra.mxu0 %v257
    %286 = vmatprep.subr.mxu0 0.0
    %287 = vmatpush1.msra.mxu0 %v258
    %288 = vmatprep.subr.mxu0 0.0
    %289 = vmatpush1.msra.mxu0 0.0
    %290 = vmatprep.subr.mxu0 0.0
    %291 = vmatpush1.msra.mxu0 0.0
    %292 = vmatprep.subr.mxu0 0.0
    %293 = vmatpush1.msra.mxu0 0.0
    %294 = vmatprep.subr.mxu0 0.0
    %295 = vmatpush1.msra.mxu0 0.0
    %296 = vmatprep.subr.mxu0 0.0
    %297 = vmatpush1.msra.mxu0 0.0
    %298 = vmatprep.subr.mxu0 0.0
    %299 = vmatpush1.msra.mxu0 0.0
    %300 = vmatprep.subr.mxu0 0.0
    %301 = vmatpush1.msra.mxu0 0.0
    %302 = vmatprep.subr.mxu0 0.0
    %303 = vmatpush1.msra.mxu0 0.0
    %304 = vmatprep.subr.mxu0 0.0
    %305 = vmatpush1.msra.mxu0 0.0
    %306 = vmatprep.subr.mxu0 0.0
    %307 = vmatpush1.msra.mxu0 0.0
    %308 = vmatprep.subr.mxu0 0.0
    %309 = vmatpush1.msra.mxu0 0.0
    %310 = vmatprep.subr.mxu0 0.0
    %311 = vmatpush1.msra.mxu0 0.0
    %312 = vmatprep.subr.mxu0 0.0
    %313 = vmatpush1.msra.mxu0 0.0
    %314 = vmatprep.subr.mxu0 0.0
    %315 = vmatpush1.msra.mxu0 0.0
    %316 = vmatprep.subr.mxu0 0.0
    %317 = vmatpush1.msra.mxu0 0.0
    %318 = vmatprep.subr.mxu0 0.0
    %319 = vmatpush1.msra.mxu0 0.0
    %320 = vmatprep.subr.mxu0 0.0
    %321 = vmatpush1.msra.mxu0 0.0
    %322 = vmatprep.subr.mxu0 0.0
    %323 = vmatpush1.msra.mxu0 0.0
    %324 = vmatprep.subr.mxu0 0.0
    %325 = vmatpush1.msra.mxu0 0.0
    %326 = vmatprep.subr.mxu0 0.0
    %327 = vmatpush1.msra.mxu0 0.0
    %328 = vmatprep.subr.mxu0 0.0
    %329 = vmatpush1.msra.mxu0 0.0
    %330 = vmatprep.subr.mxu0 0.0
    %331 = vmatpush1.msra.mxu0 0.0
    %332 = vmatprep.subr.mxu0 0.0
    %333 = vmatpush1.msra.mxu0 0.0
    %334 = vmatprep.subr.mxu0 0.0
    %335 = vmatpush1.msra.mxu0 0.0
    %336 = vmatprep.mubr.f32.mxu0 0.0
    %337 = vmatmul.mubr.f32.gmra.mrb[0].mxu0 %v267
    %v338 = vpop.f32.mrb[0].mxu0
    %v339 = vadd.f32 %v264, %v338
    %v340 = vpop.f32.mrb[0].mxu0
    %341 = vmatprep.mubr.f32.mxu0 0.0
    %342 = vmatmul.mubr.f32.gmra.mrb[0].mxu0 %v270
    %v343 = vpop.f32.mrb[0].mxu0
    %v344 = vadd.f32 %v264, %v343
    %v345 = vpop.f32.mrb[0].mxu0
    %346 = vdwg.mxu0
    %v347 = vmax.f32 %v339, 0.0
    %v348 = vmax.f32 %v344, 0.0
    %v349 = vld [vmem:[#allocation7] sm:$0xff]
    %v350 = vld [vmem:[#allocation7 + $0x8] sm:$0xff]
    %v351 = vld [vmem:[#allocation7 + $0x10] sm:$0xff]
    %v352 = vld [vmem:[#allocation7 + $0x18] sm:$0xff]
    %v353 = vld [vmem:[#allocation7 + $0x20] sm:$0xff]
    %v354 = vld [vmem:[#allocation7 + $0x28] sm:$0xff]
    %v355 = vld [vmem:[#allocation7 + $0x30] sm:$0xff]
    %v356 = vld [vmem:[#allocation7 + $0x38] sm:$0xff]
    %v357 = vld [vmem:[%s8] sm:$0x1]
    %v359 = vlaneseq
    %v360 = vshrl.u32 %v359, 7
    %v361 = vsub.s32 0, %v360
    %v362 = vrot.slane %v357, %v361
    %v365 = vsel %vm203, %v347, 0
    %v368 = vsel %vm203, %v348, 0
    %370 = vmatprep.subr.mxu0 0.0
    %371 = vmatpush1.msra.mxu0 %v349
    %372 = vmatprep.subr.mxu0 0.0
    %373 = vmatpush1.msra.mxu0 %v350
    %374 = vmatprep.subr.mxu0 0.0
    %375 = vmatpush1.msra.mxu0 %v351
    %376 = vmatprep.subr.mxu0 0.0
    %377 = vmatpush1.msra.mxu0 %v352
    %378 = vmatprep.subr.mxu0 0.0
    %379 = vmatpush1.msra.mxu0 %v353
    %380 = vmatprep.subr.mxu0 0.0
    %381 = vmatpush1.msra.mxu0 %v354
    %382 = vmatprep.subr.mxu0 0.0
    %383 = vmatpush1.msra.mxu0 %v355
    %384 = vmatprep.subr.mxu0 0.0
    %385 = vmatpush1.msra.mxu0 %v356
    %386 = vmatprep.subr.mxu0 0.0
    %387 = vmatpush1.msra.mxu0 0.0
    %388 = vmatprep.subr.mxu0 0.0
    %389 = vmatpush1.msra.mxu0 0.0
    %390 = vmatprep.subr.mxu0 0.0
    %391 = vmatpush1.msra.mxu0 0.0
    %392 = vmatprep.subr.mxu0 0.0
    %393 = vmatpush1.msra.mxu0 0.0
    %394 = vmatprep.subr.mxu0 0.0
    %395 = vmatpush1.msra.mxu0 0.0
    %396 = vmatprep.subr.mxu0 0.0
    %397 = vmatpush1.msra.mxu0 0.0
    %398 = vmatprep.subr.mxu0 0.0
    %399 = vmatpush1.msra.mxu0 0.0
    %400 = vmatprep.subr.mxu0 0.0
    %401 = vmatpush1.msra.mxu0 0.0
    %402 = vmatprep.subr.mxu0 0.0
    %403 = vmatpush1.msra.mxu0 0.0
    %404 = vmatprep.subr.mxu0 0.0
    %405 = vmatpush1.msra.mxu0 0.0
    %406 = vmatprep.subr.mxu0 0.0
    %407 = vmatpush1.msra.mxu0 0.0
    %408 = vmatprep.subr.mxu0 0.0
    %409 = vmatpush1.msra.mxu0 0.0
    %410 = vmatprep.subr.mxu0 0.0
    %411 = vmatpush1.msra.mxu0 0.0
    %412 = vmatprep.subr.mxu0 0.0
    %413 = vmatpush1.msra.mxu0 0.0
    %414 = vmatprep.subr.mxu0 0.0
    %415 = vmatpush1.msra.mxu0 0.0
    %416 = vmatprep.subr.mxu0 0.0
    %417 = vmatpush1.msra.mxu0 0.0
    %418 = vmatprep.subr.mxu0 0.0
    %419 = vmatpush1.msra.mxu0 0.0
    %420 = vmatprep.subr.mxu0 0.0
    %421 = vmatpush1.msra.mxu0 0.0
    %422 = vmatprep.subr.mxu0 0.0
    %423 = vmatpush1.msra.mxu0 0.0
    %424 = vmatprep.subr.mxu0 0.0
    %425 = vmatpush1.msra.mxu0 0.0
    %426 = vmatprep.subr.mxu0 0.0
    %427 = vmatpush1.msra.mxu0 0.0
    %428 = vmatprep.subr.mxu0 0.0
    %429 = vmatpush1.msra.mxu0 0.0
    %430 = vmatprep.subr.mxu0 0.0
    %431 = vmatpush1.msra.mxu0 0.0
    %432 = vmatprep.subr.mxu0 0.0
    %433 = vmatpush1.msra.mxu0 0.0
    %434 = vmatprep.mubr.f32.mxu0 0.0
    %435 = vmatmul.mubr.f32.gmra.mrb[0].mxu0 %v365
    %v436 = vpop.f32.mrb[0].mxu0
    %v437 = vadd.f32 %v362, %v436
    %v438 = vpop.f32.mrb[0].mxu0
    %439 = vmatprep.mubr.f32.mxu0 0.0
    %440 = vmatmul.mubr.f32.gmra.mrb[0].mxu0 %v368
    %v441 = vpop.f32.mrb[0].mxu0
    %v442 = vadd.f32 %v362, %v441
    %v443 = vpop.f32.mrb[0].mxu0
    %444 = vdwg.mxu0
    %v445 = vmax.f32 %v437, 0.0
    %v446 = vmax.f32 %v442, 0.0
    %v447 = vld [vmem:[#allocation9] sm:$0xff]
    %v448 = vld [vmem:[#allocation9 + $0x8] sm:$0xff]
    %v449 = vld [vmem:[#allocation9 + $0x10] sm:$0xff]
    %v450 = vld [vmem:[#allocation9 + $0x18] sm:$0xff]
    %v451 = vld [vmem:[#allocation9 + $0x20] sm:$0xff]
    %v452 = vld [vmem:[#allocation9 + $0x28] sm:$0xff]
    %v453 = vld [vmem:[#allocation9 + $0x30] sm:$0xff]
    %v454 = vld [vmem:[#allocation9 + $0x38] sm:$0xff]
    %v455 = vld [vmem:[%s10] sm:$0x1]
    %v457 = vlaneseq
    %v458 = vshrl.u32 %v457, 7
    %v459 = vsub.s32 0, %v458
    %v460 = vrot.slane %v455, %v459
    %v463 = vsel %vm203, %v445, 0
    %v466 = vsel %vm203, %v446, 0
    %468 = vmatprep.subr.mxu0 0.0
    %469 = vmatpush1.msra.mxu0 %v447
    %470 = vmatprep.subr.mxu0 0.0
    %471 = vmatpush1.msra.mxu0 %v448
    %472 = vmatprep.subr.mxu0 0.0
    %473 = vmatpush1.msra.mxu0 %v449
    %474 = vmatprep.subr.mxu0 0.0
    %475 = vmatpush1.msra.mxu0 %v450
    %476 = vmatprep.subr.mxu0 0.0
    %477 = vmatpush1.msra.mxu0 %v451
    %478 = vmatprep.subr.mxu0 0.0
    %479 = vmatpush1.msra.mxu0 %v452
    %480 = vmatprep.subr.mxu0 0.0
    %481 = vmatpush1.msra.mxu0 %v453
    %482 = vmatprep.subr.mxu0 0.0
    %483 = vmatpush1.msra.mxu0 %v454
    %484 = vmatprep.subr.mxu0 0.0
    %485 = vmatpush1.msra.mxu0 0.0
    %486 = vmatprep.subr.mxu0 0.0
    %487 = vmatpush1.msra.mxu0 0.0
    %488 = vmatprep.subr.mxu0 0.0
    %489 = vmatpush1.msra.mxu0 0.0
    %490 = vmatprep.subr.mxu0 0.0
    %491 = vmatpush1.msra.mxu0 0.0
    %492 = vmatprep.subr.mxu0 0.0
    %493 = vmatpush1.msra.mxu0 0.0
    %494 = vmatprep.subr.mxu0 0.0
    %495 = vmatpush1.msra.mxu0 0.0
    %496 = vmatprep.subr.mxu0 0.0
    %497 = vmatpush1.msra.mxu0 0.0
    %498 = vmatprep.subr.mxu0 0.0
    %499 = vmatpush1.msra.mxu0 0.0
    %500 = vmatprep.subr.mxu0 0.0
    %501 = vmatpush1.msra.mxu0 0.0
    %502 = vmatprep.subr.mxu0 0.0
    %503 = vmatpush1.msra.mxu0 0.0
    %504 = vmatprep.subr.mxu0 0.0
    %505 = vmatpush1.msra.mxu0 0.0
    %506 = vmatprep.subr.mxu0 0.0
    %507 = vmatpush1.msra.mxu0 0.0
    %508 = vmatprep.subr.mxu0 0.0
    %509 = vmatpush1.msra.mxu0 0.0
    %510 = vmatprep.subr.mxu0 0.0
    %511 = vmatpush1.msra.mxu0 0.0
    %512 = vmatprep.subr.mxu0 0.0
    %513 = vmatpush1.msra.mxu0 0.0
    %514 = vmatprep.subr.mxu0 0.0
    %515 = vmatpush1.msra.mxu0 0.0
    %516 = vmatprep.subr.mxu0 0.0
    %517 = vmatpush1.msra.mxu0 0.0
    %518 = vmatprep.subr.mxu0 0.0
    %519 = vmatpush1.msra.mxu0 0.0
    %520 = vmatprep.subr.mxu0 0.0
    %521 = vmatpush1.msra.mxu0 0.0
    %522 = vmatprep.subr.mxu0 0.0
    %523 = vmatpush1.msra.mxu0 0.0
    %524 = vmatprep.subr.mxu0 0.0
    %525 = vmatpush1.msra.mxu0 0.0
    %526 = vmatprep.subr.mxu0 0.0
    %527 = vmatpush1.msra.mxu0 0.0
    %528 = vmatprep.subr.mxu0 0.0
    %529 = vmatpush1.msra.mxu0 0.0
    %530 = vmatprep.subr.mxu0 0.0
    %531 = vmatpush1.msra.mxu0 0.0
    %532 = vmatprep.mubr.f32.mxu0 0.0
    %533 = vmatmul.mubr.f32.gmra.mrb[0].mxu0 %v463
    %v534 = vpop.f32.mrb[0].mxu0
    %v535 = vadd.f32 %v460, %v534
    %v536 = vpop.f32.mrb[0].mxu0
    %537 = vmatprep.mubr.f32.mxu0 0.0
    %538 = vmatmul.mubr.f32.gmra.mrb[0].mxu0 %v466
    %v539 = vpop.f32.mrb[0].mxu0
    %v540 = vadd.f32 %v460, %v539
    %v541 = vpop.f32.mrb[0].mxu0
    %542 = vdwg.mxu0
    %543 = vst [vmem:[%s11] sm:$0xff] %v535
    %544 = vst [vmem:[%s11 + $0x8] sm:$0xff] %v540
    // Predicated region
    $region66: #{double_prop_mb_forward.1} parent=1 // pred_check
      _
    $region67: #{double_prop_mb_forward.1} parent=1 // pred_check_branch
      %546 = sbr.rel (0) target = $region69
    $region68: #{double_prop_mb_forward.1} parent=1 // pred_region
      _
    $region69: #{double_prop_mb_forward.1} parent=1 // pred_fallthru
      _
    // Predicated region
    $region70: #{double_prop_mb_forward.1} parent=1 // pred_check
      _
    $region71: #{double_prop_mb_forward.1} parent=1 // pred_check_branch
      %548 = sbr.rel (0) target = $region73
    $region72: #{double_prop_mb_forward.1} parent=1 // pred_region
      _
    $region73: #{double_prop_mb_forward.1} parent=1 // pred_fallthru
      _
    %549 = vsyncpa [#allocation3], 1
    %550 = vsyncpa [#allocation5], 1
    %551 = vsyncpa [#allocation8], 1

</llo_original>
